<compile_context>
chip_gen: v7x
topology: tpu7x:2x2x1
jax: 0.10.0
libtpu: 0.0.40
codegen_flags: <defaults>
</compile_context>

<pallas_src>
import functools

import jax
import jax.numpy as jnp
from jax.experimental import pallas as pl
from jax.experimental.pallas import tpu as pltpu


MAX_TILE_B = 128   # max batch tile (one full MXU pass worth of rows)
LANE = 128         # lane width; feature dims padded to a multiple of this
SUBLANE = 8        # sublane width; batch padded to a multiple of this


def _round_up(v, m):
    return ((v + m - 1) // m) * m


def _pad2(a, shape):
    return jnp.pad(a, [(0, s - d) for d, s in zip(a.shape, shape)])


# --------------------------------------------------------------------------
# Kernels
# --------------------------------------------------------------------------
def _mlp_eval_kernel(x_ref, w1_ref, b1_ref, w2_ref, b2_ref, o_ref,
                     *, bf16_matmul):
    """One evaluation of func(x) = tanh(x @ W1 + b1) @ W2 + b2 on a batch tile."""
    in_dt = jnp.bfloat16 if bf16_matmul else jnp.float32
    x = x_ref[...].astype(in_dt)
    w1 = w1_ref[...].astype(in_dt)
    w2 = w2_ref[...].astype(in_dt)
    # Matmuls on the MXU with f32 accumulation; bias add + tanh stay in f32
    # (tanh goes to the EUP, bias add to the VPU -- both off the MXU slot).
    h = jnp.tanh(
        jnp.dot(x, w1, preferred_element_type=jnp.float32) + b1_ref[...]
    )
    out = (
        jnp.dot(h.astype(in_dt), w2, preferred_element_type=jnp.float32)
        + b2_ref[...]
    )
    o_ref[...] = out.astype(o_ref.dtype)


def _euler_fused_kernel(x_ref, w1_ref, b1_ref, w2_ref, b2_ref, o_ref,
                        *, num_steps, dt, unroll, bf16_matmul):
    """Fused explicit-Euler solve: num_steps steps of x += dt * func(x) in one
    kernel launch, with weights/biases hoisted out of the loop (resident for
    the whole solve)."""
    in_dt = jnp.bfloat16 if bf16_matmul else jnp.float32
    # Hoist weight loads / bias reads out of the hot loop (JAX does not CSE).
    w1 = w1_ref[...].astype(in_dt)
    w2 = w2_ref[...].astype(in_dt)
    b1 = b1_ref[...]
    b2 = b2_ref[...]
    dt_f = jnp.float32(dt)

    def step(_, x):
        h = jnp.tanh(
            jnp.dot(x.astype(in_dt), w1, preferred_element_type=jnp.float32)
            + b1
        )
        dx = (
            jnp.dot(h.astype(in_dt), w2, preferred_element_type=jnp.float32)
            + b2
        )
        return x + dt_f * dx

    x0 = x_ref[...].astype(jnp.float32)
    xN = jax.lax.fori_loop(0, num_steps, step, x0, unroll=unroll)
    o_ref[...] = xN.astype(o_ref.dtype)


# --------------------------------------------------------------------------
# Wrappers
# --------------------------------------------------------------------------
def _choose_tile_b(batch):
    # Small batches: one tile of exactly round_up(batch, 8) rows (no wasted
    # 128-row padding).  Large batches: 128-row tiles over a parallel grid.
    return min(MAX_TILE_B, _round_up(batch, SUBLANE))


def _pad_all(x, params, tile_b):
    w1, b1, w2, b2 = params
    batch, dim = x.shape
    hidden = w1.shape[1]
    dim_p = _round_up(dim, LANE)
    hid_p = _round_up(hidden, LANE)
    batch_p = _round_up(batch, tile_b)
    x_p = _pad2(x, (batch_p, dim_p))
    w1_p = _pad2(w1, (dim_p, hid_p))
    b1_p = _pad2(b1, (1, hid_p))
    w2_p = _pad2(w2, (hid_p, dim_p))
    b2_p = _pad2(b2, (1, dim_p))
    return (x_p, w1_p, b1_p, w2_p, b2_p), (batch_p, dim_p, hid_p)


def _specs(tile_b, dim_p, hid_p):
    # x/out tiles stream over the batch grid; weights/biases are VMEM-resident
    # (constant index_map => no re-DMA across grid iterations).
    in_specs = [
        pl.BlockSpec((tile_b, dim_p), lambda i: (i, 0)),
        pl.BlockSpec((dim_p, hid_p), lambda i: (0, 0)),
        pl.BlockSpec((1, hid_p), lambda i: (0, 0)),
        pl.BlockSpec((hid_p, dim_p), lambda i: (0, 0)),
        pl.BlockSpec((1, dim_p), lambda i: (0, 0)),
    ]
    out_spec = pl.BlockSpec((tile_b, dim_p), lambda i: (i, 0))
    return in_specs, out_spec


def neural_ode_forward(t, x, params, *, bf16_matmul=False):
    """Equivalent of NeuralODE.forward(t, x) = func(x). `t` is ignored, exactly
    matching the PyTorch module's semantics."""
    del t  # unused by the module's forward
    batch, dim = x.shape
    tile_b = _choose_tile_b(batch)
    (x_p, w1_p, b1_p, w2_p, b2_p), (batch_p, dim_p, hid_p) = _pad_all(
        x, params, tile_b)
    in_specs, out_spec = _specs(tile_b, dim_p, hid_p)

    out_p = pl.pallas_call(
        functools.partial(_mlp_eval_kernel, bf16_matmul=bf16_matmul),
        out_shape=jax.ShapeDtypeStruct((batch_p, dim_p), x.dtype),
        grid=(batch_p // tile_b,),
        in_specs=in_specs,
        out_specs=out_spec,
        compiler_params=pltpu.CompilerParams(
            dimension_semantics=("parallel",)),
    )(x_p, w1_p, b1_p, w2_p, b2_p)
    return out_p[:batch, :dim]


def neural_ode_euler_solve(x, params, *, num_steps, dt, bf16_matmul=False):
    """Fused Euler integration of dx/dt = func(x): one pallas_call advances
    `num_steps` steps per batch tile with weights resident in VMEM."""
    batch, dim = x.shape
    tile_b = _choose_tile_b(batch)
    (x_p, w1_p, b1_p, w2_p, b2_p), (batch_p, dim_p, hid_p) = _pad_all(
        x, params, tile_b)
    in_specs, out_spec = _specs(tile_b, dim_p, hid_p)
    unroll = num_steps <= 16  # give the LLO scheduler visibility on short loops

    out_p = pl.pallas_call(
        functools.partial(_euler_fused_kernel, num_steps=num_steps,
                          dt=float(dt), unroll=unroll,
                          bf16_matmul=bf16_matmul),
        out_shape=jax.ShapeDtypeStruct((batch_p, dim_p), x.dtype),
        grid=(batch_p // tile_b,),
        in_specs=in_specs,
        out_specs=out_spec,
        compiler_params=pltpu.CompilerParams(
            dimension_semantics=("parallel",)),
    )(x_p, w1_p, b1_p, w2_p, b2_p)
    return out_p[:batch, :dim]


def init_params(key, dim, hidden, dtype=jnp.float32):
    k1, k2, k3, k4 = jax.random.split(key, 4)
    w1 = jax.random.normal(k1, (dim, hidden), dtype) * 0.1
    b1 = jax.random.normal(k2, (1, hidden), dtype) * 0.01
    w2 = jax.random.normal(k3, (hidden, dim), dtype) * 0.1
    b2 = jax.random.normal(k4, (1, dim), dtype) * 0.01
    return (w1, b1, w2, b2)


if __name__ == "__main__":
    key = jax.random.PRNGKey(0)
    kx, kp = jax.random.split(key)

    # Small shapes consistent with the module; features pad to one lane tile.
    batch, dim, hidden = 8, 16, 32
    x = jax.random.normal(kx, (batch, dim), jnp.float32)
    t = jnp.float32(0.5)  # ignored, as in the PyTorch module
    params = init_params(kp, dim, hidden)
    w1, b1, w2, b2 = params

    # --- module forward: single func(x) evaluation ------------------------
    out = neural_ode_forward(t, x, params)
    out = jax.block_until_ready(out)
    ref = jnp.tanh(x @ w1 + b1) @ w2 + b2
    assert out.shape == x.shape
    assert jnp.allclose(out, ref, atol=1e-5, rtol=1e-5)

    # --- fused multi-step Euler solve (launch/DMA amortization) -----------
    num_steps, dt = 16, 0.05
    xT = neural_ode_euler_solve(x, params, num_steps=num_steps, dt=dt)
    xT = jax.block_until_ready(xT)
    x_ref = x
    for _ in range(num_steps):
        x_ref = x_ref + dt * (jnp.tanh(x_ref @ w1 + b1) @ w2 + b2)
    assert xT.shape == x.shape
    assert jnp.allclose(xT, x_ref, atol=1e-4, rtol=1e-4)

    # --- larger batch path exercises the parallel batch grid --------------
    xb = jax.random.normal(kx, (256, dim), jnp.float32)
    outb = jax.block_until_ready(neural_ode_forward(t, xb, params))
    refb = jnp.tanh(xb @ w1 + b1) @ w2 + b2
    assert jnp.allclose(outb, refb, atol=1e-5, rtol=1e-5)

    # TODO(synk): flip bf16_matmul=True on v6e/v7x for MXU peak; loosen the
    # reference tolerance to ~1e-2 if you do.
    print("KERNEL_OK")
</pallas_src>

<mosaic_0001>
module attributes {stable_mosaic.version = 11 : i64} {
  func.func @_mlp_eval_kernel(%arg0: i32, %arg1: memref<8x128xf32, #tpu.memory_space<vmem>>, %arg2: memref<128x128xf32, #tpu.memory_space<vmem>>, %arg3: memref<1x128xf32, #tpu.memory_space<vmem>>, %arg4: memref<128x128xf32, #tpu.memory_space<vmem>>, %arg5: memref<1x128xf32, #tpu.memory_space<vmem>>, %arg6: memref<8x128xf32, #tpu.memory_space<vmem>>) attributes {dimension_semantics = [#tpu.dimension_semantics<parallel>], iteration_bounds = array<i64: 1>, scalar_prefetch = 0 : i64, scratch_operands = 0 : i64, tpu.core_type = #tpu.core_type<tc>, window_params = [{transform_indices = @transform_0, window_bounds = array<i64: 8, 128>}, {pipeline_mode = #tpu.pipeline_mode<synchronous>, transform_indices = @transform_1, window_bounds = array<i64: 128, 128>}, {pipeline_mode = #tpu.pipeline_mode<synchronous>, transform_indices = @transform_2, window_bounds = array<i64: 1, 128>}, {pipeline_mode = #tpu.pipeline_mode<synchronous>, transform_indices = @transform_3, window_bounds = array<i64: 128, 128>}, {pipeline_mode = #tpu.pipeline_mode<synchronous>, transform_indices = @transform_4, window_bounds = array<i64: 1, 128>}, {transform_indices = @transform_5, window_bounds = array<i64: 8, 128>}]} {
    %c0 = arith.constant 0 : index
    %c0_0 = arith.constant 0 : index
    %0 = vector.load %arg1[%c0, %c0_0] : memref<8x128xf32, #tpu.memory_space<vmem>>, vector<8x128xf32>
    %c0_1 = arith.constant 0 : index
    %c0_2 = arith.constant 0 : index
    %1 = vector.load %arg2[%c0_1, %c0_2] : memref<128x128xf32, #tpu.memory_space<vmem>>, vector<128x128xf32>
    %c0_3 = arith.constant 0 : index
    %c0_4 = arith.constant 0 : index
    %2 = vector.load %arg4[%c0_3, %c0_4] : memref<128x128xf32, #tpu.memory_space<vmem>>, vector<128x128xf32>
    %cst = arith.constant dense<0.000000e+00> : vector<8x128xf32>
    %3 = tpu.matmul %0, %1, %cst {dimension_numbers = #tpu.dot_dimension_numbers<[1], [0], [0], [1], [0, 0, 1, 1], [], []>} : vector<8x128xf32>, vector<128x128xf32>, vector<8x128xf32> -> vector<8x128xf32>
    %c0_5 = arith.constant 0 : index
    %c0_6 = arith.constant 0 : index
    %4 = vector.load %arg3[%c0_5, %c0_6] : memref<1x128xf32, #tpu.memory_space<vmem>>, vector<1x128xf32>
    %5 = vector.broadcast %4 : vector<1x128xf32> to vector<8x128xf32>
    %6 = arith.addf %3, %5 : vector<8x128xf32>
    %7 = math.tanh %6 : vector<8x128xf32>
    %cst_7 = arith.constant dense<0.000000e+00> : vector<8x128xf32>
    %8 = tpu.matmul %7, %2, %cst_7 {dimension_numbers = #tpu.dot_dimension_numbers<[1], [0], [0], [1], [0, 0, 1, 1], [], []>} : vector<8x128xf32>, vector<128x128xf32>, vector<8x128xf32> -> vector<8x128xf32>
    %c0_8 = arith.constant 0 : index
    %c0_9 = arith.constant 0 : index
    %9 = vector.load %arg5[%c0_8, %c0_9] : memref<1x128xf32, #tpu.memory_space<vmem>>, vector<1x128xf32>
    %10 = vector.broadcast %9 : vector<1x128xf32> to vector<8x128xf32>
    %11 = arith.addf %8, %10 : vector<8x128xf32>
    %c0_10 = arith.constant 0 : index
    %c0_11 = arith.constant 0 : index
    %12 = vector.load %arg6[%c0_10, %c0_11] : memref<8x128xf32, #tpu.memory_space<vmem>>, vector<8x128xf32>
    tpu.vector_store %arg6[%c0_10, %c0_11], %11 {strides = array<i32>} : memref<8x128xf32, #tpu.memory_space<vmem>>, vector<8x128xf32>,
    return
  }
  func.func @transform_0(%arg0: i32) -> (i32, i32) {
    %c0_i32 = arith.constant 0 : i32
    %c0_i32_0 = arith.constant 0 : i32
    return %arg0, %c0_i32 : i32, i32
  }
  func.func @transform_1(%arg0: i32) -> (i32, i32) {
    %c0_i32 = arith.constant 0 : i32
    %c0_i32_0 = arith.constant 0 : i32
    %c0_i32_1 = arith.constant 0 : i32
    return %c0_i32, %c0_i32_0 : i32, i32
  }
  func.func @transform_2(%arg0: i32) -> (i32, i32) {
    %c0_i32 = arith.constant 0 : i32
    %c0_i32_0 = arith.constant 0 : i32
    %c0_i32_1 = arith.constant 0 : i32
    return %c0_i32, %c0_i32_0 : i32, i32
  }
  func.func @transform_3(%arg0: i32) -> (i32, i32) {
    %c0_i32 = arith.constant 0 : i32
    %c0_i32_0 = arith.constant 0 : i32
    %c0_i32_1 = arith.constant 0 : i32
    return %c0_i32, %c0_i32_0 : i32, i32
  }
  func.func @transform_4(%arg0: i32) -> (i32, i32) {
    %c0_i32 = arith.constant 0 : i32
    %c0_i32_0 = arith.constant 0 : i32
    %c0_i32_1 = arith.constant 0 : i32
    return %c0_i32, %c0_i32_0 : i32, i32
  }
  func.func @transform_5(%arg0: i32) -> (i32, i32) {
    %c0_i32 = arith.constant 0 : i32
    %c0_i32_0 = arith.constant 0 : i32
    return %arg0, %c0_i32 : i32, i32
  }
}

</mosaic_0001>

<llo_original>
// kernel: tpu_custom_call.1
$region0: #{tpu_custom_call.1}
  #allocation0 [shape = 'u32[]', space=smem, size = 0x4, offset = 0x4, fixed_abs, tag = 'smem constant byte address 0x4 - core index']
  #allocation1 [shape = 'u32[144,128]{1,0:T(1,128)}', space=vmem, size = 0x12000, scoped, tag = 'internal scratch']
  %s0 = inlined_call_operand.hbm [shape: f32[8,128], index: 0, kind: input, shape index: {}]
  %s1 = inlined_call_operand.hbm [shape: f32[128,128], index: 1, kind: input, shape index: {}]
  %s2 = inlined_call_operand.vmem [shape: f32[1,128], index: 2, kind: input, shape index: {}]
  %s3 = inlined_call_operand.hbm [shape: f32[128,128], index: 3, kind: input, shape index: {}]
  %s4 = inlined_call_operand.vmem [shape: f32[1,128], index: 4, kind: input, shape index: {}]
  %s5 = inlined_call_operand.hbm [shape: f32[8,128], index: 5, kind: output, shape index: {}]
  %s6 = sld [smem:[#allocation0]]
  $region42: #{tpu_custom_call.1} parent=0
    _
  %s8 = ssub.s32 1, %s6
  %s9 = scalar_select 0, %s8, %s6
  $region1: #{tpu_custom_call.1} parent=0
    #allocation2 [shape = 'u8[4096]{0}', space=vmem, size = 0x1000, scoped, tag = 'input window, operand 0, single buffered']
    #allocation3 [shape = 's32[1]{0}', space=sflag, size = 0x4, scoped, tag = 'scoped memory for tpu_custom_call.1']
    #allocation4 [shape = 's32[1]{0}', space=sflag, size = 0x4, scoped, tag = 'scoped memory for tpu_custom_call.1']
    #allocation5 [shape = 'u8[65536]{0}', space=vmem, size = 0x10000, scoped, tag = 'input window, operand 1, single buffered']
    #allocation6 [shape = 's32[1]{0}', space=sflag, size = 0x4, scoped, tag = 'scoped memory for tpu_custom_call.1']
    #allocation7 [shape = 'u8[65536]{0}', space=vmem, size = 0x10000, scoped, tag = 'input window, operand 3, single buffered']
    #allocation8 [shape = 'u8[4096]{0}', space=vmem, size = 0x1000, scoped, tag = 'output window, operand 0, single buffered']
    %10 = vsyncpa [#allocation3], 0
    %11 = vsyncpa [#allocation6], 0
    %12 = vsyncpa [#allocation4], 0
    // Predicated region
    $region2: #{tpu_custom_call.1} parent=1 // pred_check
      _
    $region3: #{tpu_custom_call.1} parent=1 // pred_check_branch
      %14 = sbr.rel (0) target = $region5
    $region4: #{tpu_custom_call.1} parent=1 // pred_region
      %s16 = ssub.s32 128, 128
      %17 = vsyncadd [#allocation3], %s16
      %s19 = sshll.u32 [#allocation2], 4
      %s20 = int_to_ptr.vmem [resolvable:$true] %s19
      %22 = dma.hbm_to_vmem [thread:$0]  %s0, 128, %s20, [#allocation3]
    $region5: #{tpu_custom_call.1} parent=1 // pred_fallthru
      _
    // Predicated region
    $region6: #{tpu_custom_call.1} parent=1 // pred_check
      _
    $region7: #{tpu_custom_call.1} parent=1 // pred_check_branch
      %24 = sbr.rel (0) target = $region9
    $region8: #{tpu_custom_call.1} parent=1 // pred_region
      %s26 = ssub.s32 2048, 2048
      %27 = vsyncadd [#allocation6], %s26
      %s28 = sshll.u32 [#allocation5], 4
      %s29 = int_to_ptr.vmem [resolvable:$true] %s28
      %34 = dma.hbm_to_vmem [thread:$0]  %s1, 2048, %s29, [#allocation6], 128, 128, 8
    $region9: #{tpu_custom_call.1} parent=1 // pred_fallthru
      _
    // Predicated region
    $region10: #{tpu_custom_call.1} parent=1 // pred_check
      _
    $region11: #{tpu_custom_call.1} parent=1 // pred_check_branch
      %36 = sbr.rel (0) target = $region13
    $region12: #{tpu_custom_call.1} parent=1 // pred_region
      _
    $region13: #{tpu_custom_call.1} parent=1 // pred_fallthru
      _
    // Predicated region
    $region14: #{tpu_custom_call.1} parent=1 // pred_check
      _
    $region15: #{tpu_custom_call.1} parent=1 // pred_check_branch
      %38 = sbr.rel (0) target = $region17
    $region16: #{tpu_custom_call.1} parent=1 // pred_region
      %s40 = ssub.s32 2048, 2048
      %41 = vsyncadd [#allocation6], %s40
      %s42 = sshll.u32 [#allocation7], 4
      %s43 = int_to_ptr.vmem [resolvable:$true] %s42
      %48 = dma.hbm_to_vmem [thread:$0]  %s3, 2048, %s43, [#allocation6], 128, 128, 8
    $region17: #{tpu_custom_call.1} parent=1 // pred_fallthru
      _
    // Predicated region
    $region18: #{tpu_custom_call.1} parent=1 // pred_check
      _
    $region19: #{tpu_custom_call.1} parent=1 // pred_check_branch
      %50 = sbr.rel (0) target = $region21
    $region20: #{tpu_custom_call.1} parent=1 // pred_region
      _
    $region21: #{tpu_custom_call.1} parent=1 // pred_fallthru
      _
    // Predicated region
    $region22: #{tpu_custom_call.1} parent=1 // pred_check
      _
    $region23: #{tpu_custom_call.1} parent=1 // pred_check_branch
      %52 = sbr.rel (0) target = $region25
    $region24: #{tpu_custom_call.1} parent=1 // pred_region
      %53 = dma.done [#allocation3], 128
    $region25: #{tpu_custom_call.1} parent=1 // pred_fallthru
      _
    // Predicated region
    $region26: #{tpu_custom_call.1} parent=1 // pred_check
      _
    $region27: #{tpu_custom_call.1} parent=1 // pred_check_branch
      %55 = sbr.rel (0) target = $region29
    $region28: #{tpu_custom_call.1} parent=1 // pred_region
      %56 = dma.done [#allocation6], 2048
    $region29: #{tpu_custom_call.1} parent=1 // pred_fallthru
      _
    // Predicated region
    $region30: #{tpu_custom_call.1} parent=1 // pred_check
      _
    $region31: #{tpu_custom_call.1} parent=1 // pred_check_branch
      %58 = sbr.rel (0) target = $region33
    $region32: #{tpu_custom_call.1} parent=1 // pred_region
      %59 = dma.done [#allocation6], 2048
    $region33: #{tpu_custom_call.1} parent=1 // pred_fallthru
      _
    %v60 = vld [vmem:[#allocation2] sm:$0xff]
    %v61 = vld [vmem:[#allocation5] sm:$0xff]
    %v62 = vld [vmem:[#allocation5 + $0x8] sm:$0xff]
    %v63 = vld [vmem:[#allocation5 + $0x10] sm:$0xff]
    %v64 = vld [vmem:[#allocation5 + $0x18] sm:$0xff]
    %v65 = vld [vmem:[#allocation5 + $0x20] sm:$0xff]
    %v66 = vld [vmem:[#allocation5 + $0x28] sm:$0xff]
    %v67 = vld [vmem:[#allocation5 + $0x30] sm:$0xff]
    %v68 = vld [vmem:[#allocation5 + $0x38] sm:$0xff]
    %v69 = vld [vmem:[#allocation5 + $0x40] sm:$0xff]
    %v70 = vld [vmem:[#allocation5 + $0x48] sm:$0xff]
    %v71 = vld [vmem:[#allocation5 + $0x50] sm:$0xff]
    %v72 = vld [vmem:[#allocation5 + $0x58] sm:$0xff]
    %v73 = vld [vmem:[#allocation5 + $0x60] sm:$0xff]
    %v74 = vld [vmem:[#allocation5 + $0x68] sm:$0xff]
    %v75 = vld [vmem:[#allocation5 + $0x70] sm:$0xff]
    %v76 = vld [vmem:[#allocation5 + $0x78] sm:$0xff]
    %v77 = vld [vmem:[#allocation7] sm:$0xff]
    %v78 = vld [vmem:[#allocation7 + $0x8] sm:$0xff]
    %v79 = vld [vmem:[#allocation7 + $0x10] sm:$0xff]
    %v80 = vld [vmem:[#allocation7 + $0x18] sm:$0xff]
    %v81 = vld [vmem:[#allocation7 + $0x20] sm:$0xff]
    %v82 = vld [vmem:[#allocation7 + $0x28] sm:$0xff]
    %v83 = vld [vmem:[#allocation7 + $0x30] sm:$0xff]
    %v84 = vld [vmem:[#allocation7 + $0x38] sm:$0xff]
    %v85 = vld [vmem:[#allocation7 + $0x40] sm:$0xff]
    %v86 = vld [vmem:[#allocation7 + $0x48] sm:$0xff]
    %v87 = vld [vmem:[#allocation7 + $0x50] sm:$0xff]
    %v88 = vld [vmem:[#allocation7 + $0x58] sm:$0xff]
    %v89 = vld [vmem:[#allocation7 + $0x60] sm:$0xff]
    %v90 = vld [vmem:[#allocation7 + $0x68] sm:$0xff]
    %v91 = vld [vmem:[#allocation7 + $0x70] sm:$0xff]
    %v92 = vld [vmem:[#allocation7 + $0x78] sm:$0xff]
    %v93 = vld [vmem:[%s2] sm:$0x1]
    %v95 = vlaneseq
    %v96 = vshrl.u32 %v95, 7
    %v97 = vsub.s32 0, %v96
    %v98 = vrot.slane %v93, %v97
    %100 = vmatprep.subr.mxu0 0.0
    %101 = vmatpush1.msra.mxu0 %v61
    %102 = vmatprep.subr.mxu0 0.0
    %103 = vmatpush1.msra.mxu0 %v62
    %104 = vmatprep.subr.mxu0 0.0
    %105 = vmatpush1.msra.mxu0 %v63
    %106 = vmatprep.subr.mxu0 0.0
    %107 = vmatpush1.msra.mxu0 %v64
    %108 = vmatprep.subr.mxu0 0.0
    %109 = vmatpush1.msra.mxu0 %v65
    %110 = vmatprep.subr.mxu0 0.0
    %111 = vmatpush1.msra.mxu0 %v66
    %112 = vmatprep.subr.mxu0 0.0
    %113 = vmatpush1.msra.mxu0 %v67
    %114 = vmatprep.subr.mxu0 0.0
    %115 = vmatpush1.msra.mxu0 %v68
    %116 = vmatprep.subr.mxu0 0.0
    %117 = vmatpush1.msra.mxu0 %v69
    %118 = vmatprep.subr.mxu0 0.0
    %119 = vmatpush1.msra.mxu0 %v70
    %120 = vmatprep.subr.mxu0 0.0
    %121 = vmatpush1.msra.mxu0 %v71
    %122 = vmatprep.subr.mxu0 0.0
    %123 = vmatpush1.msra.mxu0 %v72
    %124 = vmatprep.subr.mxu0 0.0
    %125 = vmatpush1.msra.mxu0 %v73
    %126 = vmatprep.subr.mxu0 0.0
    %127 = vmatpush1.msra.mxu0 %v74
    %128 = vmatprep.subr.mxu0 0.0
    %129 = vmatpush1.msra.mxu0 %v75
    %130 = vmatprep.subr.mxu0 0.0
    %131 = vmatpush1.msra.mxu0 %v76
    %132 = vmatprep.subr.mxu0 0.0
    %133 = vmatpush1.msra.mxu0 0.0
    %134 = vmatprep.subr.mxu0 0.0
    %135 = vmatpush1.msra.mxu0 0.0
    %136 = vmatprep.subr.mxu0 0.0
    %137 = vmatpush1.msra.mxu0 0.0
    %138 = vmatprep.subr.mxu0 0.0
    %139 = vmatpush1.msra.mxu0 0.0
    %140 = vmatprep.subr.mxu0 0.0
    %141 = vmatpush1.msra.mxu0 0.0
    %142 = vmatprep.subr.mxu0 0.0
    %143 = vmatpush1.msra.mxu0 0.0
    %144 = vmatprep.subr.mxu0 0.0
    %145 = vmatpush1.msra.mxu0 0.0
    %146 = vmatprep.subr.mxu0 0.0
    %147 = vmatpush1.msra.mxu0 0.0
    %148 = vmatprep.subr.mxu0 0.0
    %149 = vmatpush1.msra.mxu0 0.0
    %150 = vmatprep.subr.mxu0 0.0
    %151 = vmatpush1.msra.mxu0 0.0
    %152 = vmatprep.subr.mxu0 0.0
    %153 = vmatpush1.msra.mxu0 0.0
    %154 = vmatprep.subr.mxu0 0.0
    %155 = vmatpush1.msra.mxu0 0.0
    %156 = vmatprep.subr.mxu0 0.0
    %157 = vmatpush1.msra.mxu0 0.0
    %158 = vmatprep.subr.mxu0 0.0
    %159 = vmatpush1.msra.mxu0 0.0
    %160 = vmatprep.subr.mxu0 0.0
    %161 = vmatpush1.msra.mxu0 0.0
    %162 = vmatprep.subr.mxu0 0.0
    %163 = vmatpush1.msra.mxu0 0.0
    %164 = vmatprep.mubr.f32.mxu0 0.0
    %165 = vmatmul.mubr.f32.gmra.mrb[0].mxu0 %v60
    %v166 = vpop.f32.mrb[0].mxu0
    %v167 = vadd.f32 %v98, %v166
    %v168 = vpop.f32.mrb[0].mxu0
    %169 = vdwg.mxu0
    %v170 = vtanh.pop %v167
    %v171 = vld [vmem:[%s4] sm:$0x1]
    %v173 = vlaneseq
    %v174 = vshrl.u32 %v173, 7
    %v175 = vsub.s32 0, %v174
    %v176 = vrot.slane %v171, %v175
    %178 = vmatprep.subr.mxu0 0.0
    %179 = vmatpush1.msra.mxu0 %v77
    %180 = vmatprep.subr.mxu0 0.0
    %181 = vmatpush1.msra.mxu0 %v78
    %182 = vmatprep.subr.mxu0 0.0
    %183 = vmatpush1.msra.mxu0 %v79
    %184 = vmatprep.subr.mxu0 0.0
    %185 = vmatpush1.msra.mxu0 %v80
    %186 = vmatprep.subr.mxu0 0.0
    %187 = vmatpush1.msra.mxu0 %v81
    %188 = vmatprep.subr.mxu0 0.0
    %189 = vmatpush1.msra.mxu0 %v82
    %190 = vmatprep.subr.mxu0 0.0
    %191 = vmatpush1.msra.mxu0 %v83
    %192 = vmatprep.subr.mxu0 0.0
    %193 = vmatpush1.msra.mxu0 %v84
    %194 = vmatprep.subr.mxu0 0.0
    %195 = vmatpush1.msra.mxu0 %v85
    %196 = vmatprep.subr.mxu0 0.0
    %197 = vmatpush1.msra.mxu0 %v86
    %198 = vmatprep.subr.mxu0 0.0
    %199 = vmatpush1.msra.mxu0 %v87
    %200 = vmatprep.subr.mxu0 0.0
    %201 = vmatpush1.msra.mxu0 %v88
    %202 = vmatprep.subr.mxu0 0.0
    %203 = vmatpush1.msra.mxu0 %v89
    %204 = vmatprep.subr.mxu0 0.0
    %205 = vmatpush1.msra.mxu0 %v90
    %206 = vmatprep.subr.mxu0 0.0
    %207 = vmatpush1.msra.mxu0 %v91
    %208 = vmatprep.subr.mxu0 0.0
    %209 = vmatpush1.msra.mxu0 %v92
    %210 = vmatprep.subr.mxu0 0.0
    %211 = vmatpush1.msra.mxu0 0.0
    %212 = vmatprep.subr.mxu0 0.0
    %213 = vmatpush1.msra.mxu0 0.0
    %214 = vmatprep.subr.mxu0 0.0
    %215 = vmatpush1.msra.mxu0 0.0
    %216 = vmatprep.subr.mxu0 0.0
    %217 = vmatpush1.msra.mxu0 0.0
    %218 = vmatprep.subr.mxu0 0.0
    %219 = vmatpush1.msra.mxu0 0.0
    %220 = vmatprep.subr.mxu0 0.0
    %221 = vmatpush1.msra.mxu0 0.0
    %222 = vmatprep.subr.mxu0 0.0
    %223 = vmatpush1.msra.mxu0 0.0
    %224 = vmatprep.subr.mxu0 0.0
    %225 = vmatpush1.msra.mxu0 0.0
    %226 = vmatprep.subr.mxu0 0.0
    %227 = vmatpush1.msra.mxu0 0.0
    %228 = vmatprep.subr.mxu0 0.0
    %229 = vmatpush1.msra.mxu0 0.0
    %230 = vmatprep.subr.mxu0 0.0
    %231 = vmatpush1.msra.mxu0 0.0
    %232 = vmatprep.subr.mxu0 0.0
    %233 = vmatpush1.msra.mxu0 0.0
    %234 = vmatprep.subr.mxu0 0.0
    %235 = vmatpush1.msra.mxu0 0.0
    %236 = vmatprep.subr.mxu0 0.0
    %237 = vmatpush1.msra.mxu0 0.0
    %238 = vmatprep.subr.mxu0 0.0
    %239 = vmatpush1.msra.mxu0 0.0
    %240 = vmatprep.subr.mxu0 0.0
    %241 = vmatpush1.msra.mxu0 0.0
    %242 = vmatprep.mubr.f32.mxu0 0.0
    %243 = vmatmul.mubr.f32.gmra.mrb[0].mxu0 %v170
    %v244 = vpop.f32.mrb[0].mxu0
    %v245 = vadd.f32 %v176, %v244
    %v246 = vpop.f32.mrb[0].mxu0
    %247 = vdwg.mxu0
    %248 = vst [vmem:[#allocation8] sm:$0xff] %v245
    // Predicated region
    $region34: #{tpu_custom_call.1} parent=1 // pred_check
      _
    $region35: #{tpu_custom_call.1} parent=1 // pred_check_branch
      %250 = sbr.rel (0) target = $region37
    $region36: #{tpu_custom_call.1} parent=1 // pred_region
      %s252 = ssub.s32 128, 128
      %253 = vsyncadd [#allocation4], %s252
      %s255 = sshll.u32 [#allocation8], 4
      %s256 = int_to_ptr.vmem [resolvable:$true] %s255
      %258 = dma.vmem_to_hbm [thread:$0]  %s256, 128, %s5, [#allocation4]
    $region37: #{tpu_custom_call.1} parent=1 // pred_fallthru
      _
    // Predicated region
    $region38: #{tpu_custom_call.1} parent=1 // pred_check
      _
    $region39: #{tpu_custom_call.1} parent=1 // pred_check_branch
      %260 = sbr.rel (0) target = $region41
    $region40: #{tpu_custom_call.1} parent=1 // pred_region
      %261 = dma.done [#allocation4], 128
    $region41: #{tpu_custom_call.1} parent=1 // pred_fallthru
      _
    %262 = vsyncpa [#allocation3], 1
    %263 = vsyncpa [#allocation6], 1
    %264 = vsyncpa [#allocation4], 1

</llo_original>
